<compile_context>
chip_gen: v6e
topology: v6e:2x2x1
jax: 0.10.0
libtpu: 0.0.40
codegen_flags: <defaults>
</compile_context>

<pallas_src>
import functools
import math

import jax
import jax.numpy as jnp
from jax.experimental import pallas as pl
from jax.experimental.pallas import tpu as pltpu

_LANES = 128
_SUBLANES = 8
# Per-input, per-buffer DMA block budget.  2 MiB -> 2 inputs x 2 buffers = 8 MiB
# of pipelined VMEM, safe on every chip generation (can be raised to ~4 MiB on
# v7x where HBM is ~3.2 TB/s and per-step overhead dominates even more).
_BLOCK_BYTES = 2 * 1024 * 1024
_VMEM_LIMIT = 32 * 1024 * 1024


def _round_up(x: int, m: int) -> int:
    return ((x + m - 1) // m) * m


def _cdiv(a: int, b: int) -> int:
    return -(-a // b)


def _per_elem(diff, mode: str, delta: float):
    if mode == "mse":
        return diff * diff
    if mode == "mae":
        return jnp.abs(diff)
    if mode == "huber":
        a = jnp.abs(diff)
        d = jnp.float32(delta)
        # boundary a == delta agrees between <= here and torch's strict <
        return jnp.where(a <= d, 0.5 * a * a, d * (a - 0.5 * d))
    raise ValueError(f"loss mode {mode} not implemented")


def _make_kernel(mode: str, transform, delta: float, tm: int, m_valid: int,
                 steps: int, acc_rows: int, need_mask: bool):
    """One kernel for all paths; accumulates partial sums into its output block."""

    def kernel(p_ref, d_ref, o_ref):
        c = pl.program_id(0)          # core-split axis ("parallel")
        i = pl.program_id(1)          # reduction axis ("arbitrary")

        @pl.when(i == 0)
        def _init():
            o_ref[...] = jnp.zeros_like(o_ref)

        p = p_ref[...].astype(jnp.float32)
        d = d_ref[...].astype(jnp.float32)
        # TODO(synk): on v6e/v7x a bf16 input could keep diff/square in bf16
        # (halves vld traffic); kept f32 everywhere for parity with torch.

        if transform is None:
            per = _per_elem(p - d, mode, delta)                       # (tm, D)
        elif transform == "cos":
            dot = jnp.sum(p * d, axis=-1, keepdims=True)
            pn2 = jnp.sum(p * p, axis=-1, keepdims=True)
            dn2 = jnp.sum(d * d, axis=-1, keepdims=True)
            # single rsqrt (EUP) instead of two sqrt + one divide;
            # 1e-16 in the squared domain == torch's eps=1e-8 on the product
            vp = dot * jax.lax.rsqrt(jnp.maximum(pn2 * dn2, jnp.float32(1e-16)))
            per = _per_elem(vp - jnp.float32(1.0), mode, delta)        # (tm, 1)
        elif transform == "norm":
            vp = jnp.sqrt(jnp.sum(p * p, axis=-1, keepdims=True))
            vd = jnp.sqrt(jnp.sum(d * d, axis=-1, keepdims=True))
            per = _per_elem(vp - vd, mode, delta)                      # (tm, 1)
        else:
            raise ValueError(f"transform {transform} not implemented")

        if need_mask:
            # mask rows past the true row count (ragged last block and/or
            # overflow steps of the 2-way core split re-reading a clamped block)
            row = ((c * steps + i) * tm
                   + jax.lax.broadcasted_iota(jnp.int32, per.shape, 0))
            per = jnp.where(row < m_valid, per, jnp.float32(0.0))

        cols = per.shape[-1]
        if acc_rows == _SUBLANES:
            # VALU-only fold of sublane groups into a vreg-shaped accumulator
            o_ref[...] += jnp.sum(per.reshape(tm // _SUBLANES, _SUBLANES, cols),
                                  axis=0)
        else:
            # small single-block fast path with ragged row count
            o_ref[...] += jnp.sum(per, axis=0, keepdims=True)

    return kernel


@functools.partial(jax.jit, static_argnames=("mode", "transform", "weight", "delta"))
def base_loss(pred, data, *, mode="mse", transform=None, weight=1.0, delta=1.0):
    """JAX/Pallas equivalent of BaseLoss.forward (from_outputs == identity)."""
    if mode not in ("mse", "mae", "huber"):
        raise ValueError(f"loss mode {mode} not implemented")
    if transform not in (None, "cos", "norm"):
        raise ValueError(f"transform {transform} not implemented")
    if weight == 0:
        return jnp.float32(0.0)

    itemsize = jnp.dtype(pred.dtype).itemsize

    # ---- collapse to 2-D (M, D) without any HBM pad / repack copy ----------
    if transform is None:
        n_elem = int(math.prod(pred.shape))
        if pred.ndim >= 2:
            d_feat = pred.shape[-1]
            m = n_elem // d_feat
        elif n_elem % _LANES == 0 and n_elem >= _LANES:
            m, d_feat = n_elem // _LANES, _LANES      # lane-dense 1-D view
        else:
            # small / ragged 0-D/1-D input: one lane-padded row block
            # TODO(synk): huge ragged 1-D inputs would need a tail-chunk DMA
            m, d_feat = 1, max(n_elem, 1)
        p2 = pred.reshape(m, d_feat)
        d2 = data.reshape(m, d_feat)
        denom = n_elem
        cols = d_feat
    else:  # 'cos' / 'norm'
        d_feat = pred.shape[-1]
        m = int(math.prod(pred.shape[:-1]))
        p2 = pred.reshape(m, d_feat)
        d2 = data.reshape(m, d_feat)
        denom = m
        cols = 1

    # ---- tile sizing --------------------------------------------------------
    d_pad = _round_up(max(d_feat, 1), _LANES)          # VMEM lane padding
    row_bytes = d_pad * itemsize
    if m * row_bytes <= _BLOCK_BYTES:
        tm, nblocks = m, 1                             # small-input fast path
    else:
        tm_budget = max(_SUBLANES,
                        (_BLOCK_BYTES // row_bytes) // _SUBLANES * _SUBLANES)
        nblocks = _cdiv(m, tm_budget)
        tm = _round_up(_cdiv(m, nblocks), _SUBLANES)   # keep padding waste tiny
        nblocks = _cdiv(m, tm)

    n_split = 2 if nblocks >= 2 else 1                 # both TCs on v7x; neutral elsewhere
    steps = _cdiv(nblocks, n_split)
    need_mask = (m % tm != 0) or (n_split * steps != nblocks)
    acc_rows = _SUBLANES if tm % _SUBLANES == 0 else 1

    scale = float(weight) / float(denom)
    kernel = _make_kernel(mode, transform, float(delta), tm, m, steps,
                          acc_rows, need_mask)

    flops = (3 if transform is None else 8) * m * d_feat
    cost = pl.CostEstimate(flops=flops,
                           transcendentals=(0 if transform is None else m),
                           bytes_accessed=2 * m * d_feat * itemsize)

    last_block = nblocks - 1

    def in_map(c, i):
        # clamp overflow steps to the last valid block; their rows are masked
        return (jnp.minimum(c * steps + i, last_block), 0)

    out = pl.pallas_call(
        kernel,
        out_shape=jax.ShapeDtypeStruct((n_split * acc_rows, cols), jnp.float32),
        grid_spec=pltpu.PrefetchScalarGridSpec(
            num_scalar_prefetch=0,
            grid=(n_split, steps),
            in_specs=[
                pl.BlockSpec((tm, d_feat), in_map),
                pl.BlockSpec((tm, d_feat), in_map),
            ],
            out_specs=pl.BlockSpec((acc_rows, cols), lambda c, i: (c, 0)),
        ),
        compiler_params=pltpu.CompilerParams(
            dimension_semantics=("parallel", "arbitrary"),
            vmem_limit_bytes=_VMEM_LIMIT,
        ),
        cost_estimate=cost,
    )(p2, d2)

    # tiny final cross-lane reduce + weight/mean fold, done once on the host op
    return jnp.sum(out) * jnp.float32(scale)


def _reference(pred, data, *, mode, transform=None, weight=1.0, delta=1.0):
    """Pure-JAX reference for correctness checking."""
    p = pred.astype(jnp.float32)
    d = data.astype(jnp.float32)
    if transform == "cos":
        p2 = p.reshape(-1, p.shape[-1])
        d2 = d.reshape(-1, d.shape[-1])
        dot = jnp.sum(p2 * d2, -1)
        vp = dot / jnp.maximum(
            jnp.linalg.norm(p2, axis=-1) * jnp.linalg.norm(d2, axis=-1), 1e-8)
        vd = jnp.ones_like(vp)
    elif transform == "norm":
        vp = jnp.linalg.norm(p, axis=-1)
        vd = jnp.linalg.norm(d, axis=-1)
    else:
        vp, vd = p, d
    diff = vp - vd
    if mode == "mse":
        per = diff * diff
    elif mode == "mae":
        per = jnp.abs(diff)
    else:
        a = jnp.abs(diff)
        per = jnp.where(a <= delta, 0.5 * a * a, delta * (a - 0.5 * delta))
    return weight * jnp.mean(per)


if __name__ == "__main__":
    key = jax.random.PRNGKey(0)
    ok = True

    cases = [
        # (shape, config)  -- small shapes consistent with NewtonNet loss use
        ((2, 8, 32),     dict(mode="mse",   transform=None,   weight=1.0)),
        ((2, 8, 32),     dict(mode="mae",   transform=None,   weight=3.0)),
        ((3, 5, 20),     dict(mode="huber", transform=None,   weight=0.7, delta=1.0)),
        ((3, 5, 20),     dict(mode="mse",   transform="norm", weight=2.0)),
        ((2, 8, 32),     dict(mode="mae",   transform="norm", weight=1.0)),
        ((4, 7, 3),      dict(mode="mse",   transform="norm", weight=1.0)),   # force-like, feat=3
        ((4, 7, 3),      dict(mode="huber", transform="cos",  weight=0.5, delta=1.0)),
        ((3, 5, 20),     dict(mode="mse",   transform="cos",  weight=1.5)),
        ((2, 4096, 128), dict(mode="mse",   transform=None,   weight=1.0)),   # multi-block + 2-way split
        ((5, 1000, 128), dict(mode="mae",   transform=None,   weight=1.0)),   # ragged tail mask path
    ]

    pred = data = None
    for shape, cfg in cases:
        key, k1, k2 = jax.random.split(key, 3)
        pred = jax.random.normal(k1, shape, dtype=jnp.float32)
        data = jax.random.normal(k2, shape, dtype=jnp.float32)
        out = jax.block_until_ready(base_loss(pred, data, **cfg))
        ref = _reference(pred, data, **cfg)
        if not bool(jnp.allclose(out, ref, rtol=1e-4, atol=1e-6)):
            ok = False
            print(f"MISMATCH shape={shape} {cfg}: "
                  f"kernel={float(out)} ref={float(ref)}")

    # weight == 0 early-exit path
    zero = jax.block_until_ready(base_loss(pred, data, mode="mse", weight=0.0))
    ok = ok and (float(zero) == 0.0)

    if ok:
        print("KERNEL_OK")
</pallas_src>

<mosaic_0001>
module attributes {stable_mosaic.version = 11 : i64} {
  func.func @kernel(%arg0: i32, %arg1: i32, %arg2: memref<16x32xf32, #tpu.memory_space<vmem>>, %arg3: memref<16x32xf32, #tpu.memory_space<vmem>>, %arg4: memref<8x32xf32, #tpu.memory_space<vmem>>) attributes {dimension_semantics = [#tpu.dimension_semantics<parallel>, #tpu.dimension_semantics<arbitrary>], iteration_bounds = array<i64: 1, 1>, scalar_prefetch = 0 : i64, scratch_operands = 0 : i64, tpu.core_type = #tpu.core_type<tc>, window_params = [{transform_indices = @transform_0, window_bounds = array<i64: 16, 32>}, {transform_indices = @transform_1, window_bounds = array<i64: 16, 32>}, {transform_indices = @transform_2, window_bounds = array<i64: 8, 32>}]} {
    %c0_i32 = arith.constant 0 : i32
    %0 = arith.cmpi eq, %arg1, %c0_i32 : i32
    %1 = arith.extui %0 : i1 to i32
    %c0_i32_0 = arith.constant 0 : i32
    %2 = arith.cmpi ne, %1, %c0_i32_0 : i32
    scf.if %2 {
      %cst_8 = arith.constant 0.000000e+00 : f32
      %12 = vector.broadcast %cst_8 : f32 to vector<8x32xf32>
      %c0_9 = arith.constant 0 : index
      %c0_10 = arith.constant 0 : index
      %13 = vector.load %arg4[%c0_9, %c0_10] : memref<8x32xf32, #tpu.memory_space<vmem>>, vector<8x32xf32>
      tpu.vector_store %arg4[%c0_9, %c0_10], %12 {strides = array<i32>} : memref<8x32xf32, #tpu.memory_space<vmem>>, vector<8x32xf32>,
    } else {
    }
    %c0 = arith.constant 0 : index
    %c0_1 = arith.constant 0 : index
    %3 = vector.load %arg2[%c0, %c0_1] : memref<16x32xf32, #tpu.memory_space<vmem>>, vector<16x32xf32>
    %c0_2 = arith.constant 0 : index
    %c0_3 = arith.constant 0 : index
    %4 = vector.load %arg3[%c0_2, %c0_3] : memref<16x32xf32, #tpu.memory_space<vmem>>, vector<16x32xf32>
    %5 = arith.subf %3, %4 : vector<16x32xf32>
    %6 = arith.mulf %5, %5 : vector<16x32xf32>
    %c0_4 = arith.constant 0 : index
    %c0_5 = arith.constant 0 : index
    %7 = vector.load %arg4[%c0_4, %c0_5] : memref<8x32xf32, #tpu.memory_space<vmem>>, vector<8x32xf32>
    %8 = vector.shape_cast %6 : vector<16x32xf32> to vector<2x8x32xf32>
    %cst = arith.constant dense<0.000000e+00> : vector<8x32xf32>
    %9 = vector.multi_reduction <add>, %8, %cst [0] : vector<2x8x32xf32> to vector<8x32xf32>
    %10 = arith.addf %7, %9 : vector<8x32xf32>
    %c0_6 = arith.constant 0 : index
    %c0_7 = arith.constant 0 : index
    %11 = vector.load %arg4[%c0_6, %c0_7] : memref<8x32xf32, #tpu.memory_space<vmem>>, vector<8x32xf32>
    tpu.vector_store %arg4[%c0_6, %c0_7], %10 {strides = array<i32>} : memref<8x32xf32, #tpu.memory_space<vmem>>, vector<8x32xf32>,
    return
  }
  func.func @transform_0(%arg0: i32, %arg1: i32) -> (i32, i32) {
    %c1_i32 = arith.constant 1 : i32
    %0 = arith.muli %arg0, %c1_i32 : i32
    %1 = arith.addi %0, %arg1 : i32
    %c0_i32 = arith.constant 0 : i32
    %2 = arith.minsi %1, %c0_i32 : i32
    %c0_i32_0 = arith.constant 0 : i32
    %c0_i32_1 = arith.constant 0 : i32
    return %2, %c0_i32_0 : i32, i32
  }
  func.func @transform_1(%arg0: i32, %arg1: i32) -> (i32, i32) {
    %c1_i32 = arith.constant 1 : i32
    %0 = arith.muli %arg0, %c1_i32 : i32
    %1 = arith.addi %0, %arg1 : i32
    %c0_i32 = arith.constant 0 : i32
    %2 = arith.minsi %1, %c0_i32 : i32
    %c0_i32_0 = arith.constant 0 : i32
    %c0_i32_1 = arith.constant 0 : i32
    return %2, %c0_i32_0 : i32, i32
  }
  func.func @transform_2(%arg0: i32, %arg1: i32) -> (i32, i32) {
    %c0_i32 = arith.constant 0 : i32
    %c0_i32_0 = arith.constant 0 : i32
    return %arg0, %c0_i32 : i32, i32
  }
}

</mosaic_0001>

<llo_original>
// kernel: base_loss.1
$region0: #{base_loss.1}
  #allocation0 [shape = 'u32[]', space=smem, size = 0x4, offset = 0x4, fixed_abs, tag = 'smem constant byte address 0x4 - core index']
  #allocation1 [shape = 'u32[144,128]{1,0:T(1,128)}', space=vmem, size = 0x12000, scoped, tag = 'internal scratch']
  %s0 = inlined_call_operand.hbm [shape: f32[16,32], index: 0, kind: input, shape index: {}]
  %s1 = inlined_call_operand.hbm [shape: f32[16,32], index: 1, kind: input, shape index: {}]
  %s2 = inlined_call_operand.vmem [shape: f32[8,32], index: 2, kind: output, shape index: {}]
  %s3 = sld [smem:[#allocation0]]
  $region30: #{base_loss.1} parent=0
    _
  %s5 = ssub.s32 1, %s3
  %s6 = scalar_select 0, %s5, %s3
  $region1: #{base_loss.1} parent=0
    #allocation2 [shape = 'u8[8192]{0}', space=vmem, size = 0x2000, scoped, tag = 'input window, operand 0, single buffered']
    #allocation3 [shape = 's32[1]{0}', space=sflag, size = 0x4, scoped, tag = 'scoped memory for base_loss.1']
    #allocation4 [shape = 'u8[8192]{0}', space=vmem, size = 0x2000, scoped, tag = 'input window, operand 1, single buffered']
    #allocation5 [shape = 's32[1]{0}', space=sflag, size = 0x4, scoped, tag = 'scoped memory for base_loss.1']
    %7 = vsyncpa [#allocation3], 0
    %8 = vsyncpa [#allocation5], 0
    // Predicated region
    $region2: #{base_loss.1} parent=1 // pred_check
      _
    $region3: #{base_loss.1} parent=1 // pred_check_branch
      %10 = sbr.rel (0) target = $region5
    $region4: #{base_loss.1} parent=1 // pred_region
      %s11 = sadd.s32 0, 0
      %p12 = scmp.lt.s32.totalorder %s11, 0
      %s13 = scalar_select %p12, %s11, 0
      %s14 = smul.u32 2, %s13
      %s16 = ssub.s32 256, 256
      %17 = vsyncadd [#allocation3], %s16
      %s18 = smul.addr %s14, 128
      %s19 = scalar_lea.hbm %s0, %s18
      %s20 = sshll.u32 [#allocation2], 4
      %s21 = int_to_ptr.vmem [resolvable:$true] %s20
      %26 = dma.hbm_to_vmem [thread:$0]  %s19, 256, %s21, [#allocation3], 128, 128, 8
    $region5: #{base_loss.1} parent=1 // pred_fallthru
      _
    // Predicated region
    $region6: #{base_loss.1} parent=1 // pred_check
      _
    $region7: #{base_loss.1} parent=1 // pred_check_branch
      %28 = sbr.rel (0) target = $region9
    $region8: #{base_loss.1} parent=1 // pred_region
      %s29 = sadd.s32 0, 0
      %p30 = scmp.lt.s32.totalorder %s29, 0
      %s31 = scalar_select %p30, %s29, 0
      %s32 = smul.u32 2, %s31
      %s34 = ssub.s32 256, 256
      %35 = vsyncadd [#allocation5], %s34
      %s36 = smul.addr %s32, 128
      %s37 = scalar_lea.hbm %s1, %s36
      %s38 = sshll.u32 [#allocation4], 4
      %s39 = int_to_ptr.vmem [resolvable:$true] %s38
      %44 = dma.hbm_to_vmem [thread:$0]  %s37, 256, %s39, [#allocation5], 128, 128, 8
    $region9: #{base_loss.1} parent=1 // pred_fallthru
      _
    // Predicated region
    $region10: #{base_loss.1} parent=1 // pred_check
      _
    $region11: #{base_loss.1} parent=1 // pred_check_branch
      %46 = sbr.rel (0) target = $region13
    $region12: #{base_loss.1} parent=1 // pred_region
      %47 = dma.done [#allocation3], 256
    $region13: #{base_loss.1} parent=1 // pred_fallthru
      _
    // Predicated region
    $region14: #{base_loss.1} parent=1 // pred_check
      _
    $region15: #{base_loss.1} parent=1 // pred_check_branch
      %49 = sbr.rel (0) target = $region17
    $region16: #{base_loss.1} parent=1 // pred_region
      %50 = dma.done [#allocation5], 256
    $region17: #{base_loss.1} parent=1 // pred_fallthru
      _
    %s51 = sadd.s32 0, 0
    %p52 = scmp.lt.s32.totalorder %s51, 0
    %s53 = scalar_select %p52, %s51, 0
    %s54 = smul.u32 2, %s53
    %s55 = sadd.s32 0, 0
    %p56 = scmp.lt.s32.totalorder %s55, 0
    %s57 = scalar_select %p56, %s55, 0
    %s58 = smul.u32 2, %s57
    %p59 = scmp.eq.s32.totalorder 0, 0
    // Predicated region
    $region18: #{base_loss.1} parent=1 // pred_check
      %p60 = pneg %p59
    $region19: #{base_loss.1} parent=1 // pred_check_branch
      %62 = sbr.rel (%p60) target = $region21
    $region20: #{base_loss.1} parent=1 // pred_region
      %vm63 = vcmask 261120
      %64 = vst.msk [vmem:[%s2] sm:$0xff] %vm63, 0.0
    $region21: #{base_loss.1} parent=1 // pred_fallthru
      _
    %v65 = vld [vmem:[#allocation2] sm:$0xff]
    %v66 = vld [vmem:[#allocation2 + $0x8] sm:$0xff]
    %v67 = vld [vmem:[#allocation4] sm:$0xff]
    %v68 = vld [vmem:[#allocation4 + $0x8] sm:$0xff]
    %v69 = vsub.f32 %v65, %v67
    %v70 = vsub.f32 %v66, %v68
    %v71 = vmul.f32 %v69, %v69
    %v72 = vmul.f32 %v70, %v70
    %v73 = vld [vmem:[%s2] sm:$0xff]
    %vm74 = vcmask 261120
    %v75 = vsel %vm74, %v71, 0.0
    %v76 = vsel %vm74, %v72, 0.0
    %v77 = vadd.f32 %v75, %v76
    %v78 = vadd.f32 %v73, %v77
    %79 = vst.msk [vmem:[%s2] sm:$0xff] %vm74, %v78
    // Predicated region
    $region22: #{base_loss.1} parent=1 // pred_check
      _
    $region23: #{base_loss.1} parent=1 // pred_check_branch
      %81 = sbr.rel (0) target = $region25
    $region24: #{base_loss.1} parent=1 // pred_region
      _
    $region25: #{base_loss.1} parent=1 // pred_fallthru
      _
    // Predicated region
    $region26: #{base_loss.1} parent=1 // pred_check
      _
    $region27: #{base_loss.1} parent=1 // pred_check_branch
      %83 = sbr.rel (0) target = $region29
    $region28: #{base_loss.1} parent=1 // pred_region
      _
    $region29: #{base_loss.1} parent=1 // pred_fallthru
      _
    %84 = vsyncpa [#allocation3], 1
    %85 = vsyncpa [#allocation5], 1

</llo_original>
